<compile_context>
chip_gen: v7x
topology: tpu7x:2x2x1
jax: 0.10.0
libtpu: 0.0.40
codegen_flags: <defaults>
</compile_context>

<pallas_src>
import functools

import jax
import jax.numpy as jnp
from jax import lax
from jax.experimental import pallas as pl
from jax.experimental.pallas import tpu as pltpu


def _round_up(x: int, m: int) -> int:
    return ((x + m - 1) // m) * m


def _voxel_to_point_kernel(idx_ref, vf_ref, out_ref, *, tile_v):
    """Grid = (B, N_pad // TILE_N, V_pad // TILE_V).

    idx_ref: VMEM (1, TILE_N)  int32   flat voxel index per point (-1 = invalid/pad)
    vf_ref:  VMEM (C, TILE_V)  float32 voxel-feature tile for batch b
    out_ref: VMEM (C, TILE_N)  float32 gathered point features; resident across vi
    """
    vi = pl.program_id(2)

    # One-hot built against LOCAL tile coordinates: the +vi*tile_v shift is applied
    # to the tiny (1, TILE_N) index row, not to the big (TILE_V, TILE_N) iota.
    idx_local = idx_ref[...] - vi * tile_v                      # (1, TILE_N) i32
    tile_n = idx_local.shape[-1]
    v_ids = lax.broadcasted_iota(jnp.int32, (tile_v, tile_n), 0)
    onehot = (v_ids == idx_local).astype(jnp.bfloat16)          # (TILE_V, TILE_N)

    # Exact 3-way bf16 split of the f32 tile: hi + mid + lo == vf (bit-exact),
    # each gathered with a single-pass bf16 MXU matmul into an f32 accumulator.
    vf = vf_ref[...]                                            # (C, TILE_V) f32
    hi = vf.astype(jnp.bfloat16)
    r1 = vf - hi.astype(jnp.float32)
    mid = r1.astype(jnp.bfloat16)
    lo = (r1 - mid.astype(jnp.float32)).astype(jnp.bfloat16)

    acc = jnp.dot(hi, onehot, preferred_element_type=jnp.float32)
    acc = acc + jnp.dot(mid, onehot, preferred_element_type=jnp.float32)
    acc = acc + jnp.dot(lo, onehot, preferred_element_type=jnp.float32)

    # Accumulate directly into the resident output tile (no scratch accumulator,
    # no extra full-tile copy on the last step).
    @pl.when(vi == 0)
    def _first():
        out_ref[...] = acc

    @pl.when(vi > 0)
    def _rest():
        out_ref[...] += acc


def _pick_tiles(C, V, N, vmem_limit):
    """Choose (tile_n, n_pad, tile_v, v_pad) from the VMEM budget."""
    # Point-tile width (lanes): 256 fills the v6e/v7x MXU; 128 when N is small.
    n128 = _round_up(max(N, 1), 128)
    tile_n = 256 if n128 >= 256 else 128
    n_pad = _round_up(max(N, 1), tile_n)

    # Rough per-voxel VMEM bytes: f32 vf tile double-buffered (8*C) + three bf16
    # planes (6*C) + one-hot / iota / compare intermediates (~12*tile_n).
    budget = vmem_limit // 2
    per_v = 14 * C + 12 * tile_n
    max_tile_v = max(128, min(8192, (budget // per_v) // 128 * 128))

    if V <= max_tile_v:
        # Whole voxel axis as one full-extent block: no table padding, and the table
        # block index is constant across point tiles -> VMEM-resident per batch.
        return tile_n, n_pad, V, V

    # Tile the voxel axis: pad only to the next multiple of 128 and pick the
    # largest 128-multiple tile that divides it (keeps jnp.pad traffic tiny).
    v128 = _round_up(V, 128)
    nb = v128 // 128
    best_d = 1
    for d in range(min(max_tile_v // 128, nb), 0, -1):
        if nb % d == 0:
            best_d = d
            break
    if best_d * 128 >= 1024:
        return tile_n, n_pad, best_d * 128, v128
    # Awkward factorization: accept a larger one-time pad to keep voxel tiles big.
    tile_v = max_tile_v
    return tile_n, n_pad, tile_v, _round_up(V, tile_v)


def voxel_to_point(voxel_features, voxel_coords, num_points):
    """Pallas implementation of VoxelToPoint.forward.

    voxel_features: (B, C, D, H, W) float32
    voxel_coords:   (B, N, 3) int (non-negative; upper bound checked, like reference)
    returns:        (B, N, C) float32
    """
    B, C, D, H, W = voxel_features.shape
    N = int(num_points)
    V = D * H * W
    assert voxel_coords.shape == (B, N, 3)

    # Per-generation VMEM budget (v7x: 64 MiB physical; v5e/v6e: 128 MiB).
    try:
        vmem_cap = int(getattr(pltpu.get_tpu_info(), "vmem_capacity_bytes", 64 << 20))
    except Exception:
        vmem_cap = 64 << 20
    vmem_limit = int(min(max(vmem_cap * 3 // 4, 32 << 20), 96 << 20))

    tile_n, n_pad, tile_v, v_pad = _pick_tiles(C, V, N, vmem_limit)

    # ---- wrapper-side index math: flat index + validity (upper-bound check only,
    #      matching the reference loop). Invalid / padding slots get -1 -> zero row.
    coords = voxel_coords.astype(jnp.int32)
    x, y, z = coords[..., 0], coords[..., 1], coords[..., 2]
    valid = (x < D) & (y < H) & (z < W)
    idx = jnp.where(valid, x * (H * W) + y * W + z, -1)          # (B, N)
    if n_pad != N:
        idx = jnp.pad(idx, ((0, 0), (0, n_pad - N)), constant_values=-1)
    idx = idx.reshape(B, 1, n_pad)

    vf_flat = voxel_features.reshape(B, C, V)                    # reshape only, no transpose
    if v_pad != V:
        # Only reached when V both exceeds one tile and has no good 128-divisor tiling.
        vf_flat = jnp.pad(vf_flat, ((0, 0), (0, 0), (0, v_pad - V)))

    n_steps = n_pad // tile_n
    v_steps = v_pad // tile_v
    grid = (B, n_steps, v_steps)

    kernel = functools.partial(_voxel_to_point_kernel, tile_v=tile_v)

    # Table is read once per batch when resident (v_steps == 1), else once per point tile.
    vf_reads = 1 if v_steps == 1 else n_steps
    cost = pl.CostEstimate(
        flops=3 * 2 * B * C * v_pad * n_pad,                     # 3 bf16 passes
        transcendentals=0,
        bytes_accessed=4 * (B * C * v_pad * vf_reads + B * C * n_pad + B * n_pad),
    )

    grid_spec = pltpu.PrefetchScalarGridSpec(
        num_scalar_prefetch=0,
        grid=grid,
        in_specs=[
            # flat point indices: (B, 1, N_pad) -> (1, TILE_N) per step
            pl.BlockSpec((None, 1, tile_n), lambda b, ni, vi: (b, 0, ni)),
            # voxel table, channels on sublanes, voxels on lanes: (C, TILE_V) per step
            pl.BlockSpec((None, C, tile_v), lambda b, ni, vi: (b, 0, vi)),
        ],
        out_specs=pl.BlockSpec((None, C, tile_n), lambda b, ni, vi: (b, 0, ni)),
    )

    out_cn = pl.pallas_call(
        kernel,
        grid_spec=grid_spec,
        out_shape=jax.ShapeDtypeStruct((B, C, n_pad), jnp.float32),
        compiler_params=pltpu.CompilerParams(
            dimension_semantics=("parallel", "parallel", "arbitrary"),
            vmem_limit_bytes=vmem_limit,
        ),
        cost_estimate=cost,
    )(idx, vf_flat)

    # Tiny (B, C, N) -> (B, N, C) transpose; slice off point padding.
    return jnp.transpose(out_cn[:, :, :N], (0, 2, 1))


def _reference(voxel_features, voxel_coords):
    """Pure-JAX reference matching the PyTorch loop semantics."""
    B, C, D, H, W = voxel_features.shape
    x = voxel_coords[..., 0]
    y = voxel_coords[..., 1]
    z = voxel_coords[..., 2]
    valid = (x < D) & (y < H) & (z < W)
    xs = jnp.where(valid, x, 0)
    ys = jnp.where(valid, y, 0)
    zs = jnp.where(valid, z, 0)
    vf_flat = jnp.transpose(voxel_features, (0, 2, 3, 4, 1)).reshape(B, D * H * W, C)
    idx = xs * (H * W) + ys * W + zs                                 # (B, N)
    gathered = jnp.take_along_axis(vf_flat, idx[..., None], axis=1)  # (B, N, C)
    return jnp.where(valid[..., None], gathered, 0.0)


if __name__ == "__main__":
    key = jax.random.PRNGKey(0)
    k_feat, k_coord = jax.random.split(key)

    B, C, D, H, W = 2, 16, 8, 8, 8
    N = 8  # num_points

    voxel_features = jax.random.normal(k_feat, (B, C, D, H, W), dtype=jnp.float32)
    # Range [0, 10): some coords exceed the 8-voxel extent -> exercises the
    # out-of-bounds -> zero path.
    voxel_coords = jax.random.randint(k_coord, (B, N, 3), 0, 10, dtype=jnp.int32)

    out = voxel_to_point(voxel_features, voxel_coords, N)
    out = jax.block_until_ready(out)

    ref = _reference(voxel_features, voxel_coords)
    assert out.shape == (B, N, C)
    assert jnp.allclose(out, ref, atol=1e-5, rtol=1e-5), "mismatch vs reference"

    print("KERNEL_OK")
</pallas_src>

<mosaic_0001>
module attributes {stable_mosaic.version = 11 : i64} {
  func.func @_voxel_to_point_kernel(%arg0: i32, %arg1: i32, %arg2: i32, %arg3: memref<1x1x128xi32, #tpu.memory_space<vmem>>, %arg4: memref<1x16x512xf32, #tpu.memory_space<vmem>>, %arg5: memref<1x16x128xf32, #tpu.memory_space<vmem>>) attributes {dimension_semantics = [#tpu.dimension_semantics<parallel>, #tpu.dimension_semantics<parallel>, #tpu.dimension_semantics<arbitrary>], iteration_bounds = array<i64: 2, 1, 1>, scalar_prefetch = 0 : i64, scratch_operands = 0 : i64, tpu.core_type = #tpu.core_type<tc>, window_params = [{transform_indices = @transform_0, window_bounds = array<i64: 1, 1, 128>}, {transform_indices = @transform_1, window_bounds = array<i64: 1, 16, 512>}, {transform_indices = @transform_2, window_bounds = array<i64: 1, 16, 128>}]} {
    %c0 = arith.constant 0 : index
    %c0_0 = arith.constant 0 : index
    %c0_1 = arith.constant 0 : index
    %0 = vector.load %arg3[%c0, %c0_0, %c0_1] : memref<1x1x128xi32, #tpu.memory_space<vmem>>, vector<1x1x128xi32>
    %1 = vector.shape_cast %0 : vector<1x1x128xi32> to vector<1x128xi32>
    %c512_i32 = arith.constant 512 : i32
    %2 = arith.muli %arg2, %c512_i32 : i32
    %3 = vector.broadcast %2 : i32 to vector<1x128xi32>
    %4 = arith.subi %1, %3 : vector<1x128xi32>
    %5 = tpu.iota {dimensions = array<i32: 0>} : vector<512x128xi32>
    %6 = vector.broadcast %4 : vector<1x128xi32> to vector<512x128xi32>
    %7 = arith.cmpi eq, %5, %6 : vector<512x128xi32>
    %8 = arith.extui %7 : vector<512x128xi1> to vector<512x128xi32>
    %9 = arith.sitofp %8 : vector<512x128xi32> to vector<512x128xf32>
    %10 = arith.truncf %9 : vector<512x128xf32> to vector<512x128xbf16>
    %c0_2 = arith.constant 0 : index
    %c0_3 = arith.constant 0 : index
    %c0_4 = arith.constant 0 : index
    %11 = vector.load %arg4[%c0_2, %c0_3, %c0_4] : memref<1x16x512xf32, #tpu.memory_space<vmem>>, vector<1x16x512xf32>
    %12 = vector.shape_cast %11 : vector<1x16x512xf32> to vector<16x512xf32>
    %13 = arith.truncf %12 : vector<16x512xf32> to vector<16x512xbf16>
    %14 = arith.extf %13 : vector<16x512xbf16> to vector<16x512xf32>
    %15 = arith.subf %12, %14 : vector<16x512xf32>
    %16 = arith.truncf %15 : vector<16x512xf32> to vector<16x512xbf16>
    %17 = arith.extf %16 : vector<16x512xbf16> to vector<16x512xf32>
    %18 = arith.subf %15, %17 : vector<16x512xf32>
    %19 = arith.truncf %18 : vector<16x512xf32> to vector<16x512xbf16>
    %cst = arith.constant dense<0.000000e+00> : vector<16x128xf32>
    %20 = tpu.matmul %13, %10, %cst {dimension_numbers = #tpu.dot_dimension_numbers<[1], [0], [0], [1], [0, 0, 1, 1], [], []>} : vector<16x512xbf16>, vector<512x128xbf16>, vector<16x128xf32> -> vector<16x128xf32>
    %cst_5 = arith.constant dense<0.000000e+00> : vector<16x128xf32>
    %21 = tpu.matmul %16, %10, %cst_5 {dimension_numbers = #tpu.dot_dimension_numbers<[1], [0], [0], [1], [0, 0, 1, 1], [], []>} : vector<16x512xbf16>, vector<512x128xbf16>, vector<16x128xf32> -> vector<16x128xf32>
    %22 = arith.addf %20, %21 : vector<16x128xf32>
    %cst_6 = arith.constant dense<0.000000e+00> : vector<16x128xf32>
    %23 = tpu.matmul %19, %10, %cst_6 {dimension_numbers = #tpu.dot_dimension_numbers<[1], [0], [0], [1], [0, 0, 1, 1], [], []>} : vector<16x512xbf16>, vector<512x128xbf16>, vector<16x128xf32> -> vector<16x128xf32>
    %24 = arith.addf %22, %23 : vector<16x128xf32>
    %c0_i32 = arith.constant 0 : i32
    %25 = arith.cmpi eq, %arg2, %c0_i32 : i32
    %26 = arith.extui %25 : i1 to i32
    %c0_i32_7 = arith.constant 0 : i32
    %27 = arith.cmpi ne, %26, %c0_i32_7 : i32
    scf.if %27 {
      %c0_10 = arith.constant 0 : index
      %c0_11 = arith.constant 0 : index
      %c0_12 = arith.constant 0 : index
      %31 = vector.load %arg5[%c0_10, %c0_11, %c0_12] : memref<1x16x128xf32, #tpu.memory_space<vmem>>, vector<1x16x128xf32>
      %32 = vector.shape_cast %31 : vector<1x16x128xf32> to vector<16x128xf32>
      %33 = vector.shape_cast %24 : vector<16x128xf32> to vector<1x16x128xf32>
      tpu.vector_store %arg5[%c0_10, %c0_11, %c0_12], %33 {strides = array<i32>} : memref<1x16x128xf32, #tpu.memory_space<vmem>>, vector<1x16x128xf32>,
    } else {
    }
    %c0_i32_8 = arith.constant 0 : i32
    %28 = arith.cmpi sgt, %arg2, %c0_i32_8 : i32
    %29 = arith.extui %28 : i1 to i32
    %c0_i32_9 = arith.constant 0 : i32
    %30 = arith.cmpi ne, %29, %c0_i32_9 : i32
    scf.if %30 {
      %c0_10 = arith.constant 0 : index
      %c0_11 = arith.constant 0 : index
      %c0_12 = arith.constant 0 : index
      %31 = vector.load %arg5[%c0_10, %c0_11, %c0_12] : memref<1x16x128xf32, #tpu.memory_space<vmem>>, vector<1x16x128xf32>
      %32 = vector.shape_cast %31 : vector<1x16x128xf32> to vector<16x128xf32>
      %33 = arith.addf %32, %24 : vector<16x128xf32>
      %c0_13 = arith.constant 0 : index
      %c0_14 = arith.constant 0 : index
      %c0_15 = arith.constant 0 : index
      %34 = vector.load %arg5[%c0_13, %c0_14, %c0_15] : memref<1x16x128xf32, #tpu.memory_space<vmem>>, vector<1x16x128xf32>
      %35 = vector.shape_cast %34 : vector<1x16x128xf32> to vector<16x128xf32>
      %36 = vector.shape_cast %33 : vector<16x128xf32> to vector<1x16x128xf32>
      tpu.vector_store %arg5[%c0_13, %c0_14, %c0_15], %36 {strides = array<i32>} : memref<1x16x128xf32, #tpu.memory_space<vmem>>, vector<1x16x128xf32>,
    } else {
    }
    return
  }
  func.func @transform_0(%arg0: i32, %arg1: i32, %arg2: i32) -> (i32, i32, i32) {
    %c0_i32 = arith.constant 0 : i32
    %c0_i32_0 = arith.constant 0 : i32
    return %arg0, %c0_i32, %arg1 : i32, i32, i32
  }
  func.func @transform_1(%arg0: i32, %arg1: i32, %arg2: i32) -> (i32, i32, i32) {
    %c0_i32 = arith.constant 0 : i32
    %c0_i32_0 = arith.constant 0 : i32
    return %arg0, %c0_i32, %arg2 : i32, i32, i32
  }
  func.func @transform_2(%arg0: i32, %arg1: i32, %arg2: i32) -> (i32, i32, i32) {
    %c0_i32 = arith.constant 0 : i32
    %c0_i32_0 = arith.constant 0 : i32
    return %arg0, %c0_i32, %arg1 : i32, i32, i32
  }
}

</mosaic_0001>

<llo_original>
// kernel: tpu_custom_call.1
$region0: #{tpu_custom_call.1}
  #allocation0 [shape = 'u32[]', space=smem, size = 0x4, offset = 0x4, fixed_abs, tag = 'smem constant byte address 0x4 - core index']
  #allocation1 [shape = 'u32[144,128]{1,0:T(1,128)}', space=vmem, size = 0x12000, scoped, tag = 'internal scratch']
  %s0 = inlined_call_operand.hbm [shape: s32[2,1,128], index: 0, kind: input, shape index: {}]
  %s1 = inlined_call_operand.hbm [shape: f32[2,16,512], index: 1, kind: input, shape index: {}]
  %s2 = inlined_call_operand.hbm [shape: f32[2,16,128], index: 2, kind: output, shape index: {}]
  %s3 = sld [smem:[#allocation0]]
  $region57: #{tpu_custom_call.1} parent=0
    _
  %s5 = ssub.s32 1, %s3
  %s6 = scalar_select 0, %s5, %s3
  $region1: #{tpu_custom_call.1} parent=0
    #allocation2 [shape = 'u8[1024]{0}', space=vmem, size = 0x400, scoped, tag = 'input window, operand 0']
    #allocation3 [shape = 's32[2]{0}', space=sflag, size = 0x8, scoped, tag = 'scoped memory for tpu_custom_call.1']
    #allocation4 [shape = 's32[2]{0}', space=sflag, size = 0x8, scoped, tag = 'scoped memory for tpu_custom_call.1']
    #allocation5 [shape = 'u8[65536]{0}', space=vmem, size = 0x10000, scoped, tag = 'input window, operand 1']
    #allocation6 [shape = 's32[2]{0}', space=sflag, size = 0x8, scoped, tag = 'scoped memory for tpu_custom_call.1']
    #allocation7 [shape = 'u8[16384]{0}', space=vmem, size = 0x4000, scoped, tag = 'output window, operand 0']
    %7 = vsyncpa [#allocation3], 0
    %s8 = scalar_lea.sflag [#allocation3], 1
    %9 = vsyncpa %s8, 0
    %10 = vsyncpa [#allocation6], 0
    %s11 = scalar_lea.sflag [#allocation6], 1
    %12 = vsyncpa %s11, 0
    %13 = vsyncpa [#allocation4], 0
    %s14 = scalar_lea.sflag [#allocation4], 1
    %15 = vsyncpa %s14, 0
    loop: start=0, step=1, limit=4
    $region2: #{tpu_custom_call.1} parent=1 // loop_pre_header
      _
    $region3: #{tpu_custom_call.1} parent=1 // loop_header
      %s17 = sphi 0, %s21
      %p18 = scmp.ge.s32.totalorder %s17, 4
      %s24 = sphi 0, %s43
      %s25 = sphi 0, %s39
      %s26 = sphi 0, %s35
      %s27 = sphi 0, %s24
      %s28 = sphi 0, %s25
      %s29 = sphi 0, %s26
      %s30 = sphi 0, %s27
      %s31 = sphi 0, %s28
      %s32 = sphi 0, %s29
      %s48 = sphi 0, %s50
      %s51 = sphi 0, %s48
      %s52 = sphi 0, %s51
      %s68 = sphi 0, %s52
      %s76 = sphi 0, %s78
      %s79 = sphi 0, %s76
      %s80 = sphi 0, %s79
      %s96 = sphi 0, %s80
      %s104 = sphi 0, %s106
      %s107 = sphi 0, %s104
      %s108 = sphi 0, %s107
      %s124 = sphi 0, %s108
    $region4: #{tpu_custom_call.1} parent=1 // loop_header_branch
      %20 = sbr.rel (%p18) target = $region8
    $region5: #{tpu_custom_call.1} parent=1 // loop_body
      %s22 = ssub.s32 %s17, 1
      %s23 = ssub.s32 %s17, 2
      %s33 = sadd.s32 1, %s26
      %p34 = scmp.ge.s32.totalorder %s33, 1
      %s35 = scalar_select %p34, 0, %s33
      %s36 = sadd.s32 1, %s25
      %s37 = scalar_select %p34, %s36, %s25
      %p38 = scmp.ge.s32.totalorder %s37, 1
      %s39 = scalar_select %p38, 0, %s37
      %s40 = sadd.s32 1, %s24
      %s41 = scalar_select %p38, %s40, %s24
      %p42 = scmp.ge.s32.totalorder %s41, 2
      %s43 = scalar_select %p42, 0, %s41
      %s44 = ssub.s32 %s24, %s43
      %s45 = ssub.s32 %s25, %s39
      %s46 = sor.u32 %s44, %s45
      %p47 = scmp.eq.s32.totalorder %s46, 0
      %s49 = sadd.s32 %s48, 1
      %s50 = scalar_select %p47, %s48, %s49
      %p53 = pneg %p47
      %p54 = scmp.eq.s32.totalorder %s17, 1
      %p55 = por %p53, %p54
      %p56 = scmp.ne.s32.totalorder %s48, %s51
      %p57 = scmp.eq.s32.totalorder %s17, 0
      %p58 = por %p56, %p57
      %p59 = scmp.ne.s32.totalorder %s48, %s51
      %p60 = scmp.eq.s32.totalorder %s22, 1
      %p61 = por %p59, %p60
      %p62 = scmp.ne.s32.totalorder %s51, %s52
      %p63 = scmp.eq.s32.totalorder %s22, 0
      %p64 = por %p62, %p63
      %p65 = scmp.ne.s32.totalorder %s51, %s52
      %p66 = scmp.eq.s32.totalorder %s23, 1
      %p67 = por %p65, %p66
      %p69 = scmp.ne.s32.totalorder %s52, %s68
      %p70 = scmp.eq.s32.totalorder %s23, 0
      %p71 = por %p69, %p70
      %s72 = ssub.s32 %s24, %s43
      %s73 = ssub.s32 %s26, %s35
      %s74 = sor.u32 %s72, %s73
      %p75 = scmp.eq.s32.totalorder %s74, 0
      %s77 = sadd.s32 %s76, 1
      %s78 = scalar_select %p75, %s76, %s77
      %p81 = pneg %p75
      %p82 = scmp.eq.s32.totalorder %s17, 1
      %p83 = por %p81, %p82
      %p84 = scmp.ne.s32.totalorder %s76, %s79
      %p85 = scmp.eq.s32.totalorder %s17, 0
      %p86 = por %p84, %p85
      %p87 = scmp.ne.s32.totalorder %s76, %s79
      %p88 = scmp.eq.s32.totalorder %s22, 1
      %p89 = por %p87, %p88
      %p90 = scmp.ne.s32.totalorder %s79, %s80
      %p91 = scmp.eq.s32.totalorder %s22, 0
      %p92 = por %p90, %p91
      %p93 = scmp.ne.s32.totalorder %s79, %s80
      %p94 = scmp.eq.s32.totalorder %s23, 1
      %p95 = por %p93, %p94
      %p97 = scmp.ne.s32.totalorder %s80, %s96
      %p98 = scmp.eq.s32.totalorder %s23, 0
      %p99 = por %p97, %p98
      %s100 = ssub.s32 %s24, %s43
      %s101 = ssub.s32 %s25, %s39
      %s102 = sor.u32 %s100, %s101
      %p103 = scmp.eq.s32.totalorder %s102, 0
      %s105 = sadd.s32 %s104, 1
      %s106 = scalar_select %p103, %s104, %s105
      %p109 = pneg %p103
      %p110 = scmp.eq.s32.totalorder %s17, 1
      %p111 = por %p109, %p110
      %p112 = scmp.ne.s32.totalorder %s104, %s107
      %p113 = scmp.eq.s32.totalorder %s17, 0
      %p114 = por %p112, %p113
      %p115 = scmp.ne.s32.totalorder %s104, %s107
      %p116 = scmp.eq.s32.totalorder %s22, 1
      %p117 = por %p115, %p116
      %p118 = scmp.ne.s32.totalorder %s107, %s108
      %p119 = scmp.eq.s32.totalorder %s22, 0
      %p120 = por %p118, %p119
      %p121 = scmp.ne.s32.totalorder %s107, %s108
      %p122 = scmp.eq.s32.totalorder %s23, 1
      %p123 = por %p121, %p122
      %p125 = scmp.ne.s32.totalorder %s108, %s124
      %p126 = scmp.eq.s32.totalorder %s23, 0
      %p127 = por %p125, %p126
      %p128 = scmp.le.s32.totalorder 1, %s17
      %p129 = scmp.lt.s32.totalorder %s17, 3
      %p130 = pnand %p128, %p129
      %p131 = pneg %p130
      // Predicated region
      $region9: #{tpu_custom_call.1} parent=5 // pred_check
        _
      $region10: #{tpu_custom_call.1} parent=5 // pred_check_branch
        %133 = sbr.rel (%p130) target = $region12
      $region11: #{tpu_custom_call.1} parent=5 // pred_region
        %s134 = ssub.s32 %s17, 1
      $region12: #{tpu_custom_call.1} parent=5 // pred_fallthru
        _
      %p135 = scmp.lt.s32.totalorder %s17, 2
      // Predicated region
      $region13: #{tpu_custom_call.1} parent=5 // pred_check
        %p136 = pneg %p135
      $region14: #{tpu_custom_call.1} parent=5 // pred_check_branch
        %138 = sbr.rel (%p136) target = $region16
      $region15: #{tpu_custom_call.1} parent=5 // pred_region
        // Predicated region
        $region17: #{tpu_custom_call.1} parent=15 // pred_check
          %p139 = pneg %p58
        $region18: #{tpu_custom_call.1} parent=15 // pred_check_branch
          %141 = sbr.rel (%p139) target = $region20
        $region19: #{tpu_custom_call.1} parent=15 // pred_region
          %s142 = sand.u32 %s48, 1
          %s143 = scalar_lea.sflag [#allocation3], %s142
          %s144 = sand.u32 %s48, 1
          %s145 = scalar_lea.vmem [#allocation2], %s144
          %s147 = ssub.s32 16, 16
          %148 = vsyncadd %s143, %s147
          %s149 = sadd.s32 %s25, %s24
          %s150 = smul.addr %s149, 16
          %s151 = scalar_lea.hbm %s0, %s150
          %s153 = sshll.u32 %s145, 4
          %s154 = int_to_ptr.vmem [resolvable:$true] %s153
          %156 = dma.hbm_to_vmem [thread:$0]  %s151, 16, %s154, %s143
        $region20: #{tpu_custom_call.1} parent=15 // pred_fallthru
          _
        // Predicated region
        $region21: #{tpu_custom_call.1} parent=15 // pred_check
          %p157 = pneg %p86
        $region22: #{tpu_custom_call.1} parent=15 // pred_check_branch
          %159 = sbr.rel (%p157) target = $region24
        $region23: #{tpu_custom_call.1} parent=15 // pred_region
          %s160 = sand.u32 %s76, 1
          %s161 = scalar_lea.sflag [#allocation6], %s160
          %s162 = sand.u32 %s76, 1
          %s163 = smul.addr %s162, 64
          %s164 = scalar_lea.vmem [#allocation5], %s163
          %s165 = smul.u32 4, %s26
          %s167 = ssub.s32 1024, 1024
          %168 = vsyncadd %s161, %s167
          %s169 = smul.addr %s24, 8
          %s170 = sadd.s32 %s165, %s169
          %s171 = smul.addr %s170, 128
          %s172 = scalar_lea.hbm %s1, %s171
          %s173 = sshll.u32 %s164, 4
          %s174 = int_to_ptr.vmem [resolvable:$true] %s173
          %179 = dma.hbm_to_vmem [thread:$0]  %s172, 1024, %s174, %s161, 512, 512, 32
        $region24: #{tpu_custom_call.1} parent=15 // pred_fallthru
          _
      $region16: #{tpu_custom_call.1} parent=5 // pred_fallthru
        _
      %p180 = scmp.le.s32.totalorder 1, %s17
      %p181 = scmp.lt.s32.totalorder %s17, 3
      %p182 = pnand %p180, %p181
      %p183 = pneg %p182
      // Predicated region
      $region25: #{tpu_custom_call.1} parent=5 // pred_check
        _
      $region26: #{tpu_custom_call.1} parent=5 // pred_check_branch
        %185 = sbr.rel (%p182) target = $region28
      $region27: #{tpu_custom_call.1} parent=5 // pred_region
        %s186 = ssub.s32 %s17, 1
        %s187 = sand.u32 %s51, 1
        %s188 = scalar_lea.sflag [#allocation3], %s187
        %s189 = sand.u32 %s51, 1
        %s190 = scalar_lea.vmem [#allocation2], %s189
        // Predicated region
        $region29: #{tpu_custom_call.1} parent=27 // pred_check
          %p191 = pneg %p64
        $region30: #{tpu_custom_call.1} parent=27 // pred_check_branch
          %193 = sbr.rel (%p191) target = $region32
        $region31: #{tpu_custom_call.1} parent=27 // pred_region
          %194 = dma.done %s188, 16
        $region32: #{tpu_custom_call.1} parent=27 // pred_fallthru
          _
        %s195 = sand.u32 %s79, 1
        %s196 = scalar_lea.sflag [#allocation6], %s195
        %s197 = sand.u32 %s79, 1
        %s198 = smul.addr %s197, 64
        %s199 = scalar_lea.vmem [#allocation5], %s198
        // Predicated region
        $region33: #{tpu_custom_call.1} parent=27 // pred_check
          %p200 = pneg %p92
        $region34: #{tpu_custom_call.1} parent=27 // pred_check_branch
          %202 = sbr.rel (%p200) target = $region36
        $region35: #{tpu_custom_call.1} parent=27 // pred_region
          %203 = dma.done %s196, 1024
        $region36: #{tpu_custom_call.1} parent=27 // pred_fallthru
          _
        %s204 = sand.u32 %s51, 1
        %s205 = scalar_lea.sflag [#allocation3], %s204
        %s206 = sand.u32 %s51, 1
        %s207 = scalar_lea.vmem [#allocation2], %s206
        %p208 = pneg %p64
        %p209 = pneg %p61
        %s210 = sand.u32 %s79, 1
        %s211 = scalar_lea.sflag [#allocation6], %s210
        %s212 = sand.u32 %s79, 1
        %s213 = smul.addr %s212, 64
        %s214 = scalar_lea.vmem [#allocation5], %s213
        %p215 = pneg %p92
        %p216 = pneg %p89
        %p217 = pneg %p120
        %p218 = pneg %p117
        %s219 = sand.u32 %s107, 1
        %s220 = scalar_lea.sflag [#allocation4], %s219
        %s221 = sand.u32 %s107, 1
        %s222 = smul.addr %s221, 16
        %s223 = scalar_lea.vmem [#allocation7], %s222
        %s224 = smul.u32 4, %s29
        %v226 = vld [vmem:[%s190] sm:$0x1]
        %s227 = smul.u32 %s29, 512
        %v228 = vstv %s227
        %v229 = vsub.s32 %v226, %v228
        %v230 = vlaneseq
        %v231 = vshrl.u32 %v230, 7
        %v232 = vadd.s32 %v231, 8
        %v233 = vadd.s32 %v231, 16
        %v234 = vadd.s32 %v231, 24
        %v235 = vadd.s32 %v231, 32
        %v236 = vadd.s32 %v231, 40
        %v237 = vadd.s32 %v231, 48
        %v238 = vadd.s32 %v231, 56
        %v239 = vadd.s32 %v231, 64
        %v240 = vadd.s32 %v231, 72
        %v241 = vadd.s32 %v231, 80
        %v242 = vadd.s32 %v231, 88
        %v243 = vadd.s32 %v231, 96
        %v244 = vadd.s32 %v231, 104
        %v245 = vadd.s32 %v231, 112
        %v246 = vadd.s32 %v231, 120
        %v247 = vadd.s32 %v231, 128
        %v248 = vadd.s32 %v231, 136
        %v249 = vadd.s32 %v231, 144
        %v250 = vadd.s32 %v231, 152
        %v251 = vadd.s32 %v231, 160
        %v252 = vadd.s32 %v231, 168
        %v253 = vadd.s32 %v231, 176
        %v254 = vadd.s32 %v231, 184
        %v255 = vadd.s32 %v231, 192
        %v256 = vadd.s32 %v231, 200
        %v257 = vadd.s32 %v231, 208
        %v258 = vadd.s32 %v231, 216
        %v259 = vadd.s32 %v231, 224
        %v260 = vadd.s32 %v231, 232
        %v261 = vadd.s32 %v231, 240
        %v262 = vadd.s32 %v231, 248
        %v263 = vadd.s32 %v231, 256
        %v264 = vadd.s32 %v231, 264
        %v265 = vadd.s32 %v231, 272
        %v266 = vadd.s32 %v231, 280
        %v267 = vadd.s32 %v231, 288
        %v268 = vadd.s32 %v231, 296
        %v269 = vadd.s32 %v231, 304
        %v270 = vadd.s32 %v231, 312
        %v271 = vadd.s32 %v231, 320
        %v272 = vadd.s32 %v231, 328
        %v273 = vadd.s32 %v231, 336
        %v274 = vadd.s32 %v231, 344
        %v275 = vadd.s32 %v231, 352
        %v276 = vadd.s32 %v231, 360
        %v277 = vadd.s32 %v231, 368
        %v278 = vadd.s32 %v231, 376
        %v279 = vadd.s32 %v231, 384
        %v280 = vadd.s32 %v231, 392
        %v281 = vadd.s32 %v231, 400
        %v282 = vadd.s32 %v231, 408
        %v283 = vadd.s32 %v231, 416
        %v284 = vadd.s32 %v231, 424
        %v285 = vadd.s32 %v231, 432
        %v286 = vadd.s32 %v231, 440
        %v287 = vadd.s32 %v231, 448
        %v288 = vadd.s32 %v231, 456
        %v289 = vadd.s32 %v231, 464
        %v290 = vadd.s32 %v231, 472
        %v291 = vadd.s32 %v231, 480
        %v292 = vadd.s32 %v231, 488
        %v293 = vadd.s32 %v231, 496
        %v294 = vadd.s32 %v231, 504
        %v295 = vlaneseq
        %v296 = vshrl.u32 %v295, 7
        %v297 = vsub.s32 0, %v296
        %v298 = vrot.slane %v229, %v297
        %vm299 = vcmp.eq.s32.totalorder %v231, %v298
        %vm300 = vcmp.eq.s32.totalorder %v232, %v298
        %vm301 = vcmp.eq.s32.totalorder %v233, %v298
        %vm302 = vcmp.eq.s32.totalorder %v234, %v298
        %vm303 = vcmp.eq.s32.totalorder %v235, %v298
        %vm304 = vcmp.eq.s32.totalorder %v236, %v298
        %vm305 = vcmp.eq.s32.totalorder %v237, %v298
        %vm306 = vcmp.eq.s32.totalorder %v238, %v298
        %vm307 = vcmp.eq.s32.totalorder %v239, %v298
        %vm308 = vcmp.eq.s32.totalorder %v240, %v298
        %vm309 = vcmp.eq.s32.totalorder %v241, %v298
        %vm310 = vcmp.eq.s32.totalorder %v242, %v298
        %vm311 = vcmp.eq.s32.totalorder %v243, %v298
        %vm312 = vcmp.eq.s32.totalorder %v244, %v298
        %vm313 = vcmp.eq.s32.totalorder %v245, %v298
        %vm314 = vcmp.eq.s32.totalorder %v246, %v298
        %vm315 = vcmp.eq.s32.totalorder %v247, %v298
        %vm316 = vcmp.eq.s32.totalorder %v248, %v298
        %vm317 = vcmp.eq.s32.totalorder %v249, %v298
        %vm318 = vcmp.eq.s32.totalorder %v250, %v298
        %vm319 = vcmp.eq.s32.totalorder %v251, %v298
        %vm320 = vcmp.eq.s32.totalorder %v252, %v298
        %vm321 = vcmp.eq.s32.totalorder %v253, %v298
        %vm322 = vcmp.eq.s32.totalorder %v254, %v298
        %vm323 = vcmp.eq.s32.totalorder %v255, %v298
        %vm324 = vcmp.eq.s32.totalorder %v256, %v298
        %vm325 = vcmp.eq.s32.totalorder %v257, %v298
        %vm326 = vcmp.eq.s32.totalorder %v258, %v298
        %vm327 = vcmp.eq.s32.totalorder %v259, %v298
        %vm328 = vcmp.eq.s32.totalorder %v260, %v298
        %vm329 = vcmp.eq.s32.totalorder %v261, %v298
        %vm330 = vcmp.eq.s32.totalorder %v262, %v298
        %vm331 = vcmp.eq.s32.totalorder %v263, %v298
        %vm332 = vcmp.eq.s32.totalorder %v264, %v298
        %vm333 = vcmp.eq.s32.totalorder %v265, %v298
        %vm334 = vcmp.eq.s32.totalorder %v266, %v298
        %vm335 = vcmp.eq.s32.totalorder %v267, %v298
        %vm336 = vcmp.eq.s32.totalorder %v268, %v298
        %vm337 = vcmp.eq.s32.totalorder %v269, %v298
        %vm338 = vcmp.eq.s32.totalorder %v270, %v298
        %vm339 = vcmp.eq.s32.totalorder %v271, %v298
        %vm340 = vcmp.eq.s32.totalorder %v272, %v298
        %vm341 = vcmp.eq.s32.totalorder %v273, %v298
        %vm342 = vcmp.eq.s32.totalorder %v274, %v298
        %vm343 = vcmp.eq.s32.totalorder %v275, %v298
        %vm344 = vcmp.eq.s32.totalorder %v276, %v298
        %vm345 = vcmp.eq.s32.totalorder %v277, %v298
        %vm346 = vcmp.eq.s32.totalorder %v278, %v298
        %vm347 = vcmp.eq.s32.totalorder %v279, %v298
        %vm348 = vcmp.eq.s32.totalorder %v280, %v298
        %vm349 = vcmp.eq.s32.totalorder %v281, %v298
        %vm350 = vcmp.eq.s32.totalorder %v282, %v298
        %vm351 = vcmp.eq.s32.totalorder %v283, %v298
        %vm352 = vcmp.eq.s32.totalorder %v284, %v298
        %vm353 = vcmp.eq.s32.totalorder %v285, %v298
        %vm354 = vcmp.eq.s32.totalorder %v286, %v298
        %vm355 = vcmp.eq.s32.totalorder %v287, %v298
        %vm356 = vcmp.eq.s32.totalorder %v288, %v298
        %vm357 = vcmp.eq.s32.totalorder %v289, %v298
        %vm358 = vcmp.eq.s32.totalorder %v290, %v298
        %vm359 = vcmp.eq.s32.totalorder %v291, %v298
        %vm360 = vcmp.eq.s32.totalorder %v292, %v298
        %vm361 = vcmp.eq.s32.totalorder %v293, %v298
        %vm362 = vcmp.eq.s32.totalorder %v294, %v298
        %v363 = vsel %vm299, 1, 0
        %v364 = vsel %vm300, 1, 0
        %v365 = vsel %vm301, 1, 0
        %v366 = vsel %vm302, 1, 0
        %v367 = vsel %vm303, 1, 0
        %v368 = vsel %vm304, 1, 0
        %v369 = vsel %vm305, 1, 0
        %v370 = vsel %vm306, 1, 0
        %v371 = vsel %vm307, 1, 0
        %v372 = vsel %vm308, 1, 0
        %v373 = vsel %vm309, 1, 0
        %v374 = vsel %vm310, 1, 0
        %v375 = vsel %vm311, 1, 0
        %v376 = vsel %vm312, 1, 0
        %v377 = vsel %vm313, 1, 0
        %v378 = vsel %vm314, 1, 0
        %v379 = vsel %vm315, 1, 0
        %v380 = vsel %vm316, 1, 0
        %v381 = vsel %vm317, 1, 0
        %v382 = vsel %vm318, 1, 0
        %v383 = vsel %vm319, 1, 0
        %v384 = vsel %vm320, 1, 0
        %v385 = vsel %vm321, 1, 0
        %v386 = vsel %vm322, 1, 0
        %v387 = vsel %vm323, 1, 0
        %v388 = vsel %vm324, 1, 0
        %v389 = vsel %vm325, 1, 0
        %v390 = vsel %vm326, 1, 0
        %v391 = vsel %vm327, 1, 0
        %v392 = vsel %vm328, 1, 0
        %v393 = vsel %vm329, 1, 0
        %v394 = vsel %vm330, 1, 0
        %v395 = vsel %vm331, 1, 0
        %v396 = vsel %vm332, 1, 0
        %v397 = vsel %vm333, 1, 0
        %v398 = vsel %vm334, 1, 0
        %v399 = vsel %vm335, 1, 0
        %v400 = vsel %vm336, 1, 0
        %v401 = vsel %vm337, 1, 0
        %v402 = vsel %vm338, 1, 0
        %v403 = vsel %vm339, 1, 0
        %v404 = vsel %vm340, 1, 0
        %v405 = vsel %vm341, 1, 0
        %v406 = vsel %vm342, 1, 0
        %v407 = vsel %vm343, 1, 0
        %v408 = vsel %vm344, 1, 0
        %v409 = vsel %vm345, 1, 0
        %v410 = vsel %vm346, 1, 0
        %v411 = vsel %vm347, 1, 0
        %v412 = vsel %vm348, 1, 0
        %v413 = vsel %vm349, 1, 0
        %v414 = vsel %vm350, 1, 0
        %v415 = vsel %vm351, 1, 0
        %v416 = vsel %vm352, 1, 0
        %v417 = vsel %vm353, 1, 0
        %v418 = vsel %vm354, 1, 0
        %v419 = vsel %vm355, 1, 0
        %v420 = vsel %vm356, 1, 0
        %v421 = vsel %vm357, 1, 0
        %v422 = vsel %vm358, 1, 0
        %v423 = vsel %vm359, 1, 0
        %v424 = vsel %vm360, 1, 0
        %v425 = vsel %vm361, 1, 0
        %v426 = vsel %vm362, 1, 0
        %v427 = vcvt.s32.f32 %v363
        %v428 = vcvt.s32.f32 %v364
        %v429 = vcvt.s32.f32 %v365
        %v430 = vcvt.s32.f32 %v366
        %v431 = vcvt.s32.f32 %v367
        %v432 = vcvt.s32.f32 %v368
        %v433 = vcvt.s32.f32 %v369
        %v434 = vcvt.s32.f32 %v370
        %v435 = vcvt.s32.f32 %v371
        %v436 = vcvt.s32.f32 %v372
        %v437 = vcvt.s32.f32 %v373
        %v438 = vcvt.s32.f32 %v374
        %v439 = vcvt.s32.f32 %v375
        %v440 = vcvt.s32.f32 %v376
        %v441 = vcvt.s32.f32 %v377
        %v442 = vcvt.s32.f32 %v378
        %v443 = vcvt.s32.f32 %v379
        %v444 = vcvt.s32.f32 %v380
        %v445 = vcvt.s32.f32 %v381
        %v446 = vcvt.s32.f32 %v382
        %v447 = vcvt.s32.f32 %v383
        %v448 = vcvt.s32.f32 %v384
        %v449 = vcvt.s32.f32 %v385
        %v450 = vcvt.s32.f32 %v386
        %v451 = vcvt.s32.f32 %v387
        %v452 = vcvt.s32.f32 %v388
        %v453 = vcvt.s32.f32 %v389
        %v454 = vcvt.s32.f32 %v390
        %v455 = vcvt.s32.f32 %v391
        %v456 = vcvt.s32.f32 %v392
        %v457 = vcvt.s32.f32 %v393
        %v458 = vcvt.s32.f32 %v394
        %v459 = vcvt.s32.f32 %v395
        %v460 = vcvt.s32.f32 %v396
        %v461 = vcvt.s32.f32 %v397
        %v462 = vcvt.s32.f32 %v398
        %v463 = vcvt.s32.f32 %v399
        %v464 = vcvt.s32.f32 %v400
        %v465 = vcvt.s32.f32 %v401
        %v466 = vcvt.s32.f32 %v402
        %v467 = vcvt.s32.f32 %v403
        %v468 = vcvt.s32.f32 %v404
        %v469 = vcvt.s32.f32 %v405
        %v470 = vcvt.s32.f32 %v406
        %v471 = vcvt.s32.f32 %v407
        %v472 = vcvt.s32.f32 %v408
        %v473 = vcvt.s32.f32 %v409
        %v474 = vcvt.s32.f32 %v410
        %v475 = vcvt.s32.f32 %v411
        %v476 = vcvt.s32.f32 %v412
        %v477 = vcvt.s32.f32 %v413
        %v478 = vcvt.s32.f32 %v414
        %v479 = vcvt.s32.f32 %v415
        %v480 = vcvt.s32.f32 %v416
        %v481 = vcvt.s32.f32 %v417
        %v482 = vcvt.s32.f32 %v418
        %v483 = vcvt.s32.f32 %v419
        %v484 = vcvt.s32.f32 %v420
        %v485 = vcvt.s32.f32 %v421
        %v486 = vcvt.s32.f32 %v422
        %v487 = vcvt.s32.f32 %v423
        %v488 = vcvt.s32.f32 %v424
        %v489 = vcvt.s32.f32 %v425
        %v490 = vcvt.s32.f32 %v426
        %v491 = vpack.c.bf16 %v428, %v427
        %v492 = vpack.c.bf16 %v430, %v429
        %v493 = vpack.c.bf16 %v432, %v431
        %v494 = vpack.c.bf16 %v434, %v433
        %v495 = vpack.c.bf16 %v436, %v435
        %v496 = vpack.c.bf16 %v438, %v437
        %v497 = vpack.c.bf16 %v440, %v439
        %v498 = vpack.c.bf16 %v442, %v441
        %v499 = vpack.c.bf16 %v444, %v443
        %v500 = vpack.c.bf16 %v446, %v445
        %v501 = vpack.c.bf16 %v448, %v447
        %v502 = vpack.c.bf16 %v450, %v449
        %v503 = vpack.c.bf16 %v452, %v451
        %v504 = vpack.c.bf16 %v454, %v453
        %v505 = vpack.c.bf16 %v456, %v455
        %v506 = vpack.c.bf16 %v458, %v457
        %v507 = vpack.c.bf16 %v460, %v459
        %v508 = vpack.c.bf16 %v462, %v461
        %v509 = vpack.c.bf16 %v464, %v463
        %v510 = vpack.c.bf16 %v466, %v465
        %v511 = vpack.c.bf16 %v468, %v467
        %v512 = vpack.c.bf16 %v470, %v469
        %v513 = vpack.c.bf16 %v472, %v471
        %v514 = vpack.c.bf16 %v474, %v473
        %v515 = vpack.c.bf16 %v476, %v475
        %v516 = vpack.c.bf16 %v478, %v477
        %v517 = vpack.c.bf16 %v480, %v479
        %v518 = vpack.c.bf16 %v482, %v481
        %v519 = vpack.c.bf16 %v484, %v483
        %v520 = vpack.c.bf16 %v486, %v485
        %v521 = vpack.c.bf16 %v488, %v487
        %v522 = vpack.c.bf16 %v490, %v489
        %v523 = vld [vmem:[%s199] sm:$0xff]
        %v524 = vld [vmem:[%s199 + $0x8] sm:$0xff]
        %v525 = vld [vmem:[%s199 + $0x10] sm:$0xff]
        %v526 = vld [vmem:[%s199 + $0x18] sm:$0xff]
        %v527 = vld [vmem:[%s199 + $0x20] sm:$0xff]
        %v528 = vld [vmem:[%s199 + $0x28] sm:$0xff]
        %v529 = vld [vmem:[%s199 + $0x30] sm:$0xff]
        %v530 = vld [vmem:[%s199 + $0x38] sm:$0xff]
        %v531 = vpack.c.bf16 %v527, %v523
        %v532 = vpack.c.bf16 %v528, %v524
        %v533 = vpack.c.bf16 %v529, %v525
        %v534 = vpack.c.bf16 %v530, %v526
        %v535 = vunpack.c.l.bf16 %v531
        %v536 = vunpack.c.l.bf16 %v532
        %v537 = vunpack.c.l.bf16 %v533
        %v538 = vunpack.c.l.bf16 %v534
        %v539 = vunpack.c.h.bf16 %v531
        %v540 = vunpack.c.h.bf16 %v532
        %v541 = vunpack.c.h.bf16 %v533
        %v542 = vunpack.c.h.bf16 %v534
        %v543 = vsub.f32 %v523, %v535
        %v544 = vsub.f32 %v524, %v536
        %v545 = vsub.f32 %v525, %v537
        %v546 = vsub.f32 %v526, %v538
        %v547 = vsub.f32 %v527, %v539
        %v548 = vsub.f32 %v528, %v540
        %v549 = vsub.f32 %v529, %v541
        %v550 = vsub.f32 %v530, %v542
        %v551 = vpack.c.bf16 %v547, %v543
        %v552 = vpack.c.bf16 %v548, %v544
        %v553 = vpack.c.bf16 %v549, %v545
        %v554 = vpack.c.bf16 %v550, %v546
        %v555 = vunpack.c.l.bf16 %v551
        %v556 = vunpack.c.l.bf16 %v552
        %v557 = vunpack.c.l.bf16 %v553
        %v558 = vunpack.c.l.bf16 %v554
        %v559 = vunpack.c.h.bf16 %v551
        %v560 = vunpack.c.h.bf16 %v552
        %v561 = vunpack.c.h.bf16 %v553
        %v562 = vunpack.c.h.bf16 %v554
        %v563 = vsub.f32 %v543, %v555
        %v564 = vsub.f32 %v544, %v556
        %v565 = vsub.f32 %v545, %v557
        %v566 = vsub.f32 %v546, %v558
        %v567 = vsub.f32 %v547, %v559
        %v568 = vsub.f32 %v548, %v560
        %v569 = vsub.f32 %v549, %v561
        %v570 = vsub.f32 %v550, %v562
        %v571 = vpack.c.bf16 %v567, %v563
        %v572 = vpack.c.bf16 %v568, %v564
        %v573 = vpack.c.bf16 %v569, %v565
        %v574 = vpack.c.bf16 %v570, %v566
        %575 = vmatprep.subr.bf16.mxu0 0
        %576 = vmatpush1.bf16.msra.mxu0 %v491
        %577 = vmatprep.subr.bf16.mxu0 0
        %578 = vmatpush1.bf16.msra.mxu0 %v492
        %579 = vmatprep.subr.bf16.mxu0 0
        %580 = vmatpush1.bf16.msra.mxu0 %v493
        %581 = vmatprep.subr.bf16.mxu0 0
        %582 = vmatpush1.bf16.msra.mxu0 %v494
        %583 = vmatprep.subr.bf16.mxu0 0
        %584 = vmatpush1.bf16.msra.mxu0 %v495
        %585 = vmatprep.subr.bf16.mxu0 0
        %586 = vmatpush1.bf16.msra.mxu0 %v496
        %587 = vmatprep.subr.bf16.mxu0 0
        %588 = vmatpush1.bf16.msra.mxu0 %v497
        %589 = vmatprep.subr.bf16.mxu0 0
        %590 = vmatpush1.bf16.msra.mxu0 %v498
        %591 = vmatprep.subr.bf16.mxu0 0
        %592 = vmatpush1.bf16.msra.mxu0 %v499
        %593 = vmatprep.subr.bf16.mxu0 0
        %594 = vmatpush1.bf16.msra.mxu0 %v500
        %595 = vmatprep.subr.bf16.mxu0 0
        %596 = vmatpush1.bf16.msra.mxu0 %v501
        %597 = vmatprep.subr.bf16.mxu0 0
        %598 = vmatpush1.bf16.msra.mxu0 %v502
        %599 = vmatprep.subr.bf16.mxu0 0
        %600 = vmatpush1.bf16.msra.mxu0 %v503
        %601 = vmatprep.subr.bf16.mxu0 0
        %602 = vmatpush1.bf16.msra.mxu0 %v504
        %603 = vmatprep.subr.bf16.mxu0 0
        %604 = vmatpush1.bf16.msra.mxu0 %v505
        %605 = vmatprep.subr.bf16.mxu0 0
        %606 = vmatpush1.bf16.msra.mxu0 %v506
        %607 = vmatprep.mubr.bf16.mxu0 %v552
        %608 = vmatmul.mubr.bf16.gmra.mrb[0].mxu0 %v551
        %v609 = vpop.f32.mrb[0].mxu0
        %v610 = vadd.f32 0.0, %v609
        %v611 = vpop.f32.mrb[0].mxu0
        %v612 = vpop.f32.mrb[0].mxu0
        %v613 = vadd.f32 0.0, %v612
        %v614 = vpop.f32.mrb[0].mxu0
        %615 = vdwg.mxu0
        %616 = vmatprep.subr.bf16.mxu0 0
        %617 = vmatpush1.bf16.msra.mxu0 %v507
        %618 = vmatprep.subr.bf16.mxu0 0
        %619 = vmatpush1.bf16.msra.mxu0 %v508
        %620 = vmatprep.subr.bf16.mxu0 0
        %621 = vmatpush1.bf16.msra.mxu0 %v509
        %622 = vmatprep.subr.bf16.mxu0 0
        %623 = vmatpush1.bf16.msra.mxu0 %v510
        %624 = vmatprep.subr.bf16.mxu0 0
        %625 = vmatpush1.bf16.msra.mxu0 %v511
        %626 = vmatprep.subr.bf16.mxu0 0
        %627 = vmatpush1.bf16.msra.mxu0 %v512
        %628 = vmatprep.subr.bf16.mxu0 0
        %629 = vmatpush1.bf16.msra.mxu0 %v513
        %630 = vmatprep.subr.bf16.mxu0 0
        %631 = vmatpush1.bf16.msra.mxu0 %v514
        %632 = vmatprep.subr.bf16.mxu0 0
        %633 = vmatpush1.bf16.msra.mxu0 %v515
        %634 = vmatprep.subr.bf16.mxu0 0
        %635 = vmatpush1.bf16.msra.mxu0 %v516
        %636 = vmatprep.subr.bf16.mxu0 0
        %637 = vmatpush1.bf16.msra.mxu0 %v517
        %638 = vmatprep.subr.bf16.mxu0 0
        %639 = vmatpush1.bf16.msra.mxu0 %v518
        %640 = vmatprep.subr.bf16.mxu0 0
        %641 = vmatpush1.bf16.msra.mxu0 %v519
        %642 = vmatprep.subr.bf16.mxu0 0
        %643 = vmatpush1.bf16.msra.mxu0 %v520
        %644 = vmatprep.subr.bf16.mxu0 0
        %645 = vmatpush1.bf16.msra.mxu0 %v521
        %646 = vmatprep.subr.bf16.mxu0 0
        %647 = vmatpush1.bf16.msra.mxu0 %v522
        %648 = vmatprep.mubr.bf16.mxu0 %v554
        %649 = vmatmul.mubr.bf16.gmra.mrb[0].mxu0 %v553
        %v650 = vpop.f32.mrb[0].mxu0
        %v651 = vadd.f32 %v610, %v650
        %v652 = vpop.f32.mrb[0].mxu0
        %v653 = vpop.f32.mrb[0].mxu0
        %v654 = vadd.f32 %v613, %v653
        %v655 = vpop.f32.mrb[0].mxu0
        %656 = vdwg.mxu0
        %657 = vmatprep.subr.bf16.mxu0 0
        %658 = vmatpush1.bf16.msra.mxu0 %v491
        %659 = vmatprep.subr.bf16.mxu0 0
        %660 = vmatpush1.bf16.msra.mxu0 %v492
        %661 = vmatprep.subr.bf16.mxu0 0
        %662 = vmatpush1.bf16.msra.mxu0 %v493
        %663 = vmatprep.subr.bf16.mxu0 0
        %664 = vmatpush1.bf16.msra.mxu0 %v494
        %665 = vmatprep.subr.bf16.mxu0 0
        %666 = vmatpush1.bf16.msra.mxu0 %v495
        %667 = vmatprep.subr.bf16.mxu0 0
        %668 = vmatpush1.bf16.msra.mxu0 %v496
        %669 = vmatprep.subr.bf16.mxu0 0
        %670 = vmatpush1.bf16.msra.mxu0 %v497
        %671 = vmatprep.subr.bf16.mxu0 0
        %672 = vmatpush1.bf16.msra.mxu0 %v498
        %673 = vmatprep.subr.bf16.mxu0 0
        %674 = vmatpush1.bf16.msra.mxu0 %v499
        %675 = vmatprep.subr.bf16.mxu0 0
        %676 = vmatpush1.bf16.msra.mxu0 %v500
        %677 = vmatprep.subr.bf16.mxu0 0
        %678 = vmatpush1.bf16.msra.mxu0 %v501
        %679 = vmatprep.subr.bf16.mxu0 0
        %680 = vmatpush1.bf16.msra.mxu0 %v502
        %681 = vmatprep.subr.bf16.mxu0 0
        %682 = vmatpush1.bf16.msra.mxu0 %v503
        %683 = vmatprep.subr.bf16.mxu0 0
        %684 = vmatpush1.bf16.msra.mxu0 %v504
        %685 = vmatprep.subr.bf16.mxu0 0
        %686 = vmatpush1.bf16.msra.mxu0 %v505
        %687 = vmatprep.subr.bf16.mxu0 0
        %688 = vmatpush1.bf16.msra.mxu0 %v506
        %689 = vmatprep.mubr.bf16.mxu0 %v532
        %690 = vmatmul.mubr.bf16.gmra.mrb[0].mxu0 %v531
        %v691 = vpop.f32.mrb[0].mxu0
        %v692 = vadd.f32 %v651, %v691
        %v693 = vpop.f32.mrb[0].mxu0
        %v694 = vpop.f32.mrb[0].mxu0
        %v695 = vadd.f32 %v654, %v694
        %v696 = vpop.f32.mrb[0].mxu0
        %697 = vdwg.mxu0
        %698 = vmatprep.subr.bf16.mxu0 0
        %699 = vmatpush1.bf16.msra.mxu0 %v507
        %700 = vmatprep.subr.bf16.mxu0 0
        %701 = vmatpush1.bf16.msra.mxu0 %v508
        %702 = vmatprep.subr.bf16.mxu0 0
        %703 = vmatpush1.bf16.msra.mxu0 %v509
        %704 = vmatprep.subr.bf16.mxu0 0
        %705 = vmatpush1.bf16.msra.mxu0 %v510
        %706 = vmatprep.subr.bf16.mxu0 0
        %707 = vmatpush1.bf16.msra.mxu0 %v511
        %708 = vmatprep.subr.bf16.mxu0 0
        %709 = vmatpush1.bf16.msra.mxu0 %v512
        %710 = vmatprep.subr.bf16.mxu0 0
        %711 = vmatpush1.bf16.msra.mxu0 %v513
        %712 = vmatprep.subr.bf16.mxu0 0
        %713 = vmatpush1.bf16.msra.mxu0 %v514
        %714 = vmatprep.subr.bf16.mxu0 0
        %715 = vmatpush1.bf16.msra.mxu0 %v515
        %716 = vmatprep.subr.bf16.mxu0 0
        %717 = vmatpush1.bf16.msra.mxu0 %v516
        %718 = vmatprep.subr.bf16.mxu0 0
        %719 = vmatpush1.bf16.msra.mxu0 %v517
        %720 = vmatprep.subr.bf16.mxu0 0
        %721 = vmatpush1.bf16.msra.mxu0 %v518
        %722 = vmatprep.subr.bf16.mxu0 0
        %723 = vmatpush1.bf16.msra.mxu0 %v519
        %724 = vmatprep.subr.bf16.mxu0 0
        %725 = vmatpush1.bf16.msra.mxu0 %v520
        %726 = vmatprep.subr.bf16.mxu0 0
        %727 = vmatpush1.bf16.msra.mxu0 %v521
        %728 = vmatprep.subr.bf16.mxu0 0
        %729 = vmatpush1.bf16.msra.mxu0 %v522
        %730 = vmatprep.mubr.bf16.mxu0 %v534
        %731 = vmatmul.mubr.bf16.gmra.mrb[0].mxu0 %v533
        %v732 = vpop.f32.mrb[0].mxu0
        %v733 = vadd.f32 %v692, %v732
        %v734 = vpop.f32.mrb[0].mxu0
        %v735 = vpop.f32.mrb[0].mxu0
        %v736 = vadd.f32 %v695, %v735
        %v737 = vpop.f32.mrb[0].mxu0
        %738 = vdwg.mxu0
        %739 = vmatprep.subr.bf16.mxu0 0
        %740 = vmatpush1.bf16.msra.mxu0 %v491
        %741 = vmatprep.subr.bf16.mxu0 0
        %742 = vmatpush1.bf16.msra.mxu0 %v492
        %743 = vmatprep.subr.bf16.mxu0 0
        %744 = vmatpush1.bf16.msra.mxu0 %v493
        %745 = vmatprep.subr.bf16.mxu0 0
        %746 = vmatpush1.bf16.msra.mxu0 %v494
        %747 = vmatprep.subr.bf16.mxu0 0
        %748 = vmatpush1.bf16.msra.mxu0 %v495
        %749 = vmatprep.subr.bf16.mxu0 0
        %750 = vmatpush1.bf16.msra.mxu0 %v496
        %751 = vmatprep.subr.bf16.mxu0 0
        %752 = vmatpush1.bf16.msra.mxu0 %v497
        %753 = vmatprep.subr.bf16.mxu0 0
        %754 = vmatpush1.bf16.msra.mxu0 %v498
        %755 = vmatprep.subr.bf16.mxu0 0
        %756 = vmatpush1.bf16.msra.mxu0 %v499
        %757 = vmatprep.subr.bf16.mxu0 0
        %758 = vmatpush1.bf16.msra.mxu0 %v500
        %759 = vmatprep.subr.bf16.mxu0 0
        %760 = vmatpush1.bf16.msra.mxu0 %v501
        %761 = vmatprep.subr.bf16.mxu0 0
        %762 = vmatpush1.bf16.msra.mxu0 %v502
        %763 = vmatprep.subr.bf16.mxu0 0
        %764 = vmatpush1.bf16.msra.mxu0 %v503
        %765 = vmatprep.subr.bf16.mxu0 0
        %766 = vmatpush1.bf16.msra.mxu0 %v504
        %767 = vmatprep.subr.bf16.mxu0 0
        %768 = vmatpush1.bf16.msra.mxu0 %v505
        %769 = vmatprep.subr.bf16.mxu0 0
        %770 = vmatpush1.bf16.msra.mxu0 %v506
        %771 = vmatprep.mubr.bf16.mxu0 %v572
        %772 = vmatmul.mubr.bf16.gmra.mrb[0].mxu0 %v571
        %v773 = vpop.f32.mrb[0].mxu0
        %v774 = vadd.f32 0.0, %v773
        %v775 = vpop.f32.mrb[0].mxu0
        %v776 = vpop.f32.mrb[0].mxu0
        %v777 = vadd.f32 0.0, %v776
        %v778 = vpop.f32.mrb[0].mxu0
        %779 = vdwg.mxu0
        %780 = vmatprep.subr.bf16.mxu0 0
        %781 = vmatpush1.bf16.msra.mxu0 %v507
        %782 = vmatprep.subr.bf16.mxu0 0
        %783 = vmatpush1.bf16.msra.mxu0 %v508
        %784 = vmatprep.subr.bf16.mxu0 0
        %785 = vmatpush1.bf16.msra.mxu0 %v509
        %786 = vmatprep.subr.bf16.mxu0 0
        %787 = vmatpush1.bf16.msra.mxu0 %v510
        %788 = vmatprep.subr.bf16.mxu0 0
        %789 = vmatpush1.bf16.msra.mxu0 %v511
        %790 = vmatprep.subr.bf16.mxu0 0
        %791 = vmatpush1.bf16.msra.mxu0 %v512
        %792 = vmatprep.subr.bf16.mxu0 0
        %793 = vmatpush1.bf16.msra.mxu0 %v513
        %794 = vmatprep.subr.bf16.mxu0 0
        %795 = vmatpush1.bf16.msra.mxu0 %v514
        %796 = vmatprep.subr.bf16.mxu0 0
        %797 = vmatpush1.bf16.msra.mxu0 %v515
        %798 = vmatprep.subr.bf16.mxu0 0
        %799 = vmatpush1.bf16.msra.mxu0 %v516
        %800 = vmatprep.subr.bf16.mxu0 0
        %801 = vmatpush1.bf16.msra.mxu0 %v517
        %802 = vmatprep.subr.bf16.mxu0 0
        %803 = vmatpush1.bf16.msra.mxu0 %v518
        %804 = vmatprep.subr.bf16.mxu0 0
        %805 = vmatpush1.bf16.msra.mxu0 %v519
        %806 = vmatprep.subr.bf16.mxu0 0
        %807 = vmatpush1.bf16.msra.mxu0 %v520
        %808 = vmatprep.subr.bf16.mxu0 0
        %809 = vmatpush1.bf16.msra.mxu0 %v521
        %810 = vmatprep.subr.bf16.mxu0 0
        %811 = vmatpush1.bf16.msra.mxu0 %v522
        %812 = vmatprep.mubr.bf16.mxu0 %v574
        %813 = vmatmul.mubr.bf16.gmra.mrb[0].mxu0 %v573
        %v814 = vpop.f32.mrb[0].mxu0
        %v815 = vadd.f32 %v774, %v814
        %v816 = vpop.f32.mrb[0].mxu0
        %v817 = vpop.f32.mrb[0].mxu0
        %v818 = vadd.f32 %v777, %v817
        %v819 = vpop.f32.mrb[0].mxu0
        %820 = vdwg.mxu0
        %v821 = vadd.f32 %v733, %v815
        %v822 = vadd.f32 %v736, %v818
        %p823 = scmp.eq.s32.totalorder %s29, 0
        // Predicated region
        $region37: #{tpu_custom_call.1} parent=27 // pred_check
          %p824 = pneg %p823
        $region38: #{tpu_custom_call.1} parent=27 // pred_check_branch
          %826 = sbr.rel (%p824) target = $region40
        $region39: #{tpu_custom_call.1} parent=27 // pred_region
          %827 = vst [vmem:[%s223] sm:$0xff] %v821
          %828 = vst [vmem:[%s223 + $0x8] sm:$0xff] %v822
        $region40: #{tpu_custom_call.1} parent=27 // pred_fallthru
          _
        %p829 = scmp.gt.s32.totalorder %s29, 0
        // Predicated region
        $region41: #{tpu_custom_call.1} parent=27 // pred_check
          %p830 = pneg %p829
        $region42: #{tpu_custom_call.1} parent=27 // pred_check_branch
          %832 = sbr.rel (%p830) target = $region44
        $region43: #{tpu_custom_call.1} parent=27 // pred_region
          %v833 = vld [vmem:[%s223] sm:$0xff]
          %v834 = vld [vmem:[%s223 + $0x8] sm:$0xff]
          %v835 = vadd.f32 %v833, %v821
          %v836 = vadd.f32 %v834, %v822
          %837 = vst [vmem:[%s223] sm:$0xff] %v835
          %838 = vst [vmem:[%s223 + $0x8] sm:$0xff] %v836
        $region44: #{tpu_custom_call.1} parent=27 // pred_fallthru
          _
        %s839 = sand.u32 %s107, 1
        %s840 = scalar_lea.sflag [#allocation4], %s839
        %s841 = sand.u32 %s107, 1
        %s842 = smul.addr %s841, 16
        %s843 = scalar_lea.vmem [#allocation7], %s842
        // Predicated region
        $region45: #{tpu_custom_call.1} parent=27 // pred_check
          %p844 = pneg %p117
        $region46: #{tpu_custom_call.1} parent=27 // pred_check_branch
          %846 = sbr.rel (%p844) target = $region48
        $region47: #{tpu_custom_call.1} parent=27 // pred_region
          %s848 = ssub.s32 256, 256
          %849 = vsyncadd %s840, %s848
          %s850 = smul.addr %s27, 2
          %s851 = sadd.s32 %s28, %s850
          %s852 = smul.addr %s851, 128
          %s853 = scalar_lea.hbm %s2, %s852
          %s854 = sshll.u32 %s843, 4
          %s855 = int_to_ptr.vmem [resolvable:$true] %s854
          %860 = dma.vmem_to_hbm [thread:$0]  %s855, 256, %s853, %s840, 128, 128, 8
        $region48: #{tpu_custom_call.1} parent=27 // pred_fallthru
          _
      $region28: #{tpu_custom_call.1} parent=5 // pred_fallthru
        _
      %p861 = scmp.le.s32.totalorder 2, %s17
      // Predicated region
      $region49: #{tpu_custom_call.1} parent=5 // pred_check
        %p862 = pneg %p861
      $region50: #{tpu_custom_call.1} parent=5 // pred_check_branch
        %864 = sbr.rel (%p862) target = $region52
      $region51: #{tpu_custom_call.1} parent=5 // pred_region
        %s865 = ssub.s32 %s17, 2
        // Predicated region
        $region53: #{tpu_custom_call.1} parent=51 // pred_check
          %p866 = pneg %p123
        $region54: #{tpu_custom_call.1} parent=51 // pred_check_branch
          %868 = sbr.rel (%p866) target = $region56
        $region55: #{tpu_custom_call.1} parent=51 // pred_region
          %s869 = sand.u32 %s108, 1
          %s870 = scalar_lea.sflag [#allocation4], %s869
          %s871 = sand.u32 %s108, 1
          %s872 = smul.addr %s871, 16
          %s873 = scalar_lea.vmem [#allocation7], %s872
          %874 = dma.done %s870, 256
        $region56: #{tpu_custom_call.1} parent=51 // pred_fallthru
          _
      $region52: #{tpu_custom_call.1} parent=5 // pred_fallthru
        _
    $region6: #{tpu_custom_call.1} parent=1 // loop_footer
      %s21 = sadd.s32 1, %s17
    $region7: #{tpu_custom_call.1} parent=1 // loop_footer_branch
      %16 = sbr.rel target = $region3
    $region8: #{tpu_custom_call.1} parent=1 // loop_exit
      _
    %875 = vsyncpa [#allocation3], 1
    %s876 = scalar_lea.sflag [#allocation3], 1
    %877 = vsyncpa %s876, 1
    %878 = vsyncpa [#allocation6], 1
    %s879 = scalar_lea.sflag [#allocation6], 1
    %880 = vsyncpa %s879, 1
    %881 = vsyncpa [#allocation4], 1
    %s882 = scalar_lea.sflag [#allocation4], 1
    %883 = vsyncpa %s882, 1

</llo_original>
